<compile_context>
chip_gen: v7x
topology: tpu7x:2x2x1
jax: 0.10.0
libtpu: 0.0.40
codegen_flags: <defaults>
</compile_context>

<pallas_src>
import functools

import jax
import jax.numpy as jnp
from jax import lax
from jax.experimental import pallas as pl
from jax.experimental.pallas import tpu as pltpu

_LANES = 128


def _linear2x2_kernel(w_ref, b_ref, x_ref, o_ref):
    """nn.Linear(2, 2) applied in the flat-interleaved (lane-dense) layout.

    w_ref: (2, 2) f32 in SMEM (nn.Linear (OUT, IN) layout)
    b_ref: (2,)   f32 in SMEM
    x_ref: (tr, 128) VMEM block of x.reshape(-1):  [x0f0 x0f1 x1f0 x1f1 ...]
    o_ref: (tr, 128) VMEM block of y.reshape(-1):  [y0f0 y0f1 y1f0 y1f1 ...]
    """
    x = x_ref[...].astype(jnp.float32)

    # Rows are 128 (even) flat elements long and start at even flat offsets, so
    # lane parity == flat-index parity, and a sample's (f0, f1) pair never
    # straddles a row boundary.
    lane = lax.broadcasted_iota(jnp.int32, x.shape, dimension=1)
    is_f0 = (lane & 1) == 0                 # even lane <-> feature-0 position
    partner_idx = lane ^ 1                  # lane holding this sample's other feature

    # Pair partner via two single-step lane rotations (XLU slot).  Selecting
    # with the *rotated iota* makes the result independent of the rotation
    # direction convention; the circular wrap only lands on lanes where the
    # rolled value is not selected.
    x_r1 = pltpu.roll(x, 1, axis=1)
    x_rm1 = pltpu.roll(x, _LANES - 1, axis=1)
    lane_r1 = pltpu.roll(lane, 1, axis=1)
    partner = jnp.where(lane_r1 == partner_idx, x_r1, x_rm1)

    f0 = jnp.where(is_f0, x, partner)       # this sample's input feature 0
    f1 = jnp.where(is_f0, partner, x)       # this sample's input feature 1

    # Per-lane weight / bias patterns: output feature index == lane parity.
    w_a = jnp.where(is_f0, w_ref[0, 0], w_ref[1, 0])
    w_b = jnp.where(is_f0, w_ref[0, 1], w_ref[1, 1])
    bias = jnp.where(is_f0, b_ref[0], b_ref[1])

    # Single full-block (unmasked) store: 2 FMAs + bias per element on the VPU.
    o_ref[...] = (f0 * w_a + f1 * w_b + bias).astype(o_ref.dtype)


@functools.partial(jax.jit, static_argnames=("row_tile",))
def linear_forward(x, w, b, *, row_tile=4096):
    """y = x @ w.T + b with torch.nn.Linear(2, 2) semantics."""
    B, IN = x.shape
    OUT, IN2 = w.shape
    assert IN == 2 and IN2 == 2 and OUT == 2 and b.shape == (OUT,), (
        "this kernel is specialized to nn.Linear(2, 2)")

    n_flat = B * IN                          # == B * OUT (flat length of x and y)
    n_rows = pl.cdiv(n_flat, _LANES)         # rows of the lane-dense 2-D view
    pad = n_rows * _LANES - n_flat           # < 128; zero whenever B % 64 == 0

    x_flat = x.reshape(-1)                   # pure reshape: already interleaved
    if pad:
        x_flat = jnp.pad(x_flat, (0, pad))   # tiny tail pad only for ragged B
    x2d = x_flat.reshape(n_rows, _LANES)

    # Row tile: round to the 8-sublane granule, clamp to the full extent for
    # small inputs.  4096 rows -> 2 MiB f32 per block (in + out, double
    # buffered ~ 8 MiB VMEM).  Sweep upward on v5e/v6e (single TC: fewer steps
    # is strictly better); keep multiple blocks on v7x so both TCs get work.
    tr = max(8, (int(row_tile) // 8) * 8)
    tr = min(tr, n_rows)
    grid = (pl.cdiv(n_rows, tr),)            # last block may be partial (masked)

    y2d = pl.pallas_call(
        _linear2x2_kernel,
        out_shape=jax.ShapeDtypeStruct((n_rows, _LANES), x.dtype),
        grid=grid,
        in_specs=[
            # Tiny parameters live in SMEM as scalars, resident across steps.
            pl.BlockSpec(memory_space=pltpu.MemorySpace.SMEM),   # w (2, 2)
            pl.BlockSpec(memory_space=pltpu.MemorySpace.SMEM),   # b (2,)
            pl.BlockSpec((tr, _LANES), lambda i: (i, 0)),        # x slab
        ],
        out_specs=pl.BlockSpec((tr, _LANES), lambda i: (i, 0)),
        compiler_params=pltpu.CompilerParams(
            dimension_semantics=("parallel",),
        ),
    )(w.astype(jnp.float32), b.astype(jnp.float32), x2d)

    y_flat = y2d.reshape(-1)
    if pad:
        y_flat = y_flat[:n_flat]
    return y_flat.reshape(B, OUT)


if __name__ == "__main__":
    input_size, output_size = 2, 2
    key = jax.random.PRNGKey(0)
    kx, kw, kb = jax.random.split(key, 3)

    # Deterministic parameters with nn.Linear(2, 2) shapes.
    bound = 1.0 / (input_size ** 0.5)
    w = jax.random.uniform(kw, (output_size, input_size),
                           minval=-bound, maxval=bound, dtype=jnp.float32)
    b = jax.random.uniform(kb, (output_size,),
                           minval=-bound, maxval=bound, dtype=jnp.float32)

    # Small demo batch (single full-extent block, ragged tail).
    x_small = jax.random.normal(kx, (4, input_size), dtype=jnp.float32)
    y_small = linear_forward(x_small, w, b)
    jax.block_until_ready(y_small)
    assert jnp.allclose(y_small, x_small @ w.T + b, atol=1e-5, rtol=1e-5), \
        "mismatch vs reference (small batch)"

    # Pad-free path (B % 64 == 0) with a multi-block grid.  row_tile=8 only to
    # exercise tiling at small sizes; production default is 4096-row blocks.
    x_a = jax.random.normal(kx, (1024, input_size), dtype=jnp.float32)
    y_a = linear_forward(x_a, w, b, row_tile=8)
    jax.block_until_ready(y_a)
    assert jnp.allclose(y_a, x_a @ w.T + b, atol=1e-5, rtol=1e-5), \
        "mismatch vs reference (pad-free multi-block)"

    # Ragged batch + partial last grid block (Pallas masks the OOB rows).
    x_b = jax.random.normal(kx, (1250, input_size), dtype=jnp.float32)
    y_b = linear_forward(x_b, w, b, row_tile=8)
    jax.block_until_ready(y_b)
    assert jnp.allclose(y_b, x_b @ w.T + b, atol=1e-5, rtol=1e-5), \
        "mismatch vs reference (ragged / partial block)"

    print("KERNEL_OK")
</pallas_src>

<mosaic_0001>
module attributes {stable_mosaic.version = 11 : i64} {
  func.func @_linear2x2_kernel(%arg0: i32, %arg1: memref<2x2xf32, #tpu.memory_space<smem>>, %arg2: memref<2xf32, #tpu.memory_space<smem>>, %arg3: memref<1x128xf32, #tpu.memory_space<vmem>>, %arg4: memref<1x128xf32, #tpu.memory_space<vmem>>) attributes {dimension_semantics = [#tpu.dimension_semantics<parallel>], iteration_bounds = array<i64: 1>, scalar_prefetch = 0 : i64, scratch_operands = 0 : i64, tpu.core_type = #tpu.core_type<tc>, window_params = [{transform_indices = @transform_0, window_bounds = array<i64: 2, 2>}, {transform_indices = @transform_1, window_bounds = array<i64: 2>}, {transform_indices = @transform_2, window_bounds = array<i64: 1, 128>}, {transform_indices = @transform_3, window_bounds = array<i64: 1, 128>}]} {
    %c0 = arith.constant 0 : index
    %c0_0 = arith.constant 0 : index
    %0 = vector.load %arg3[%c0, %c0_0] : memref<1x128xf32, #tpu.memory_space<vmem>>, vector<1x128xf32>
    %1 = tpu.iota {dimensions = array<i32: 1>} : vector<1x128xi32>
    %c1_i32 = arith.constant 1 : i32
    %2 = vector.broadcast %c1_i32 : i32 to vector<1x128xi32>
    %3 = arith.andi %1, %2 : vector<1x128xi32>
    %c0_i32 = arith.constant 0 : i32
    %4 = vector.broadcast %c0_i32 : i32 to vector<1x128xi32>
    %5 = arith.cmpi eq, %3, %4 : vector<1x128xi32>
    %c1_i32_1 = arith.constant 1 : i32
    %6 = vector.broadcast %c1_i32_1 : i32 to vector<1x128xi32>
    %7 = arith.xori %1, %6 : vector<1x128xi32>
    %c1_i32_2 = arith.constant 1 : i32
    %8 = tpu.dynamic_rotate %0 by %c1_i32_2 dim 1 : vector<1x128xf32>, i32 -> vector<1x128xf32>
    %c127_i32 = arith.constant 127 : i32
    %9 = tpu.dynamic_rotate %0 by %c127_i32 dim 1 : vector<1x128xf32>, i32 -> vector<1x128xf32>
    %c1_i32_3 = arith.constant 1 : i32
    %10 = tpu.dynamic_rotate %1 by %c1_i32_3 dim 1 : vector<1x128xi32>, i32 -> vector<1x128xi32>
    %11 = arith.cmpi eq, %10, %7 : vector<1x128xi32>
    %12 = arith.select %11, %8, %9 : vector<1x128xi1>, vector<1x128xf32>
    %13 = arith.select %5, %0, %12 : vector<1x128xi1>, vector<1x128xf32>
    %14 = arith.select %5, %12, %0 : vector<1x128xi1>, vector<1x128xf32>
    %c0_4 = arith.constant 0 : index
    %c0_5 = arith.constant 0 : index
    %15 = memref.load %arg1[%c0_4, %c0_5] : memref<2x2xf32, #tpu.memory_space<smem>>
    %c1 = arith.constant 1 : index
    %c0_6 = arith.constant 0 : index
    %16 = memref.load %arg1[%c1, %c0_6] : memref<2x2xf32, #tpu.memory_space<smem>>
    %17 = vector.broadcast %15 : f32 to vector<1x128xf32>
    %18 = vector.broadcast %16 : f32 to vector<1x128xf32>
    %19 = arith.select %5, %17, %18 : vector<1x128xi1>, vector<1x128xf32>
    %c0_7 = arith.constant 0 : index
    %c1_8 = arith.constant 1 : index
    %20 = memref.load %arg1[%c0_7, %c1_8] : memref<2x2xf32, #tpu.memory_space<smem>>
    %c1_9 = arith.constant 1 : index
    %c1_10 = arith.constant 1 : index
    %21 = memref.load %arg1[%c1_9, %c1_10] : memref<2x2xf32, #tpu.memory_space<smem>>
    %22 = vector.broadcast %20 : f32 to vector<1x128xf32>
    %23 = vector.broadcast %21 : f32 to vector<1x128xf32>
    %24 = arith.select %5, %22, %23 : vector<1x128xi1>, vector<1x128xf32>
    %c0_11 = arith.constant 0 : index
    %25 = memref.load %arg2[%c0_11] : memref<2xf32, #tpu.memory_space<smem>>
    %c1_12 = arith.constant 1 : index
    %26 = memref.load %arg2[%c1_12] : memref<2xf32, #tpu.memory_space<smem>>
    %27 = vector.broadcast %25 : f32 to vector<1x128xf32>
    %28 = vector.broadcast %26 : f32 to vector<1x128xf32>
    %29 = arith.select %5, %27, %28 : vector<1x128xi1>, vector<1x128xf32>
    %30 = arith.mulf %13, %19 : vector<1x128xf32>
    %31 = arith.mulf %14, %24 : vector<1x128xf32>
    %32 = arith.addf %30, %31 : vector<1x128xf32>
    %33 = arith.addf %32, %29 : vector<1x128xf32>
    %c0_13 = arith.constant 0 : index
    %c0_14 = arith.constant 0 : index
    %34 = vector.load %arg4[%c0_13, %c0_14] : memref<1x128xf32, #tpu.memory_space<vmem>>, vector<1x128xf32>
    tpu.vector_store %arg4[%c0_13, %c0_14], %33 {strides = array<i32>} : memref<1x128xf32, #tpu.memory_space<vmem>>, vector<1x128xf32>,
    return
  }
  func.func @transform_0(%arg0: i32) -> (i32, i32) {
    %c0_i32 = arith.constant 0 : i32
    %c0_i32_0 = arith.constant 0 : i32
    %c0_i32_1 = arith.constant 0 : i32
    return %c0_i32, %c0_i32_0 : i32, i32
  }
  func.func @transform_1(%arg0: i32) -> i32 {
    %c0_i32 = arith.constant 0 : i32
    %c0_i32_0 = arith.constant 0 : i32
    return %c0_i32 : i32
  }
  func.func @transform_2(%arg0: i32) -> (i32, i32) {
    %c0_i32 = arith.constant 0 : i32
    %c0_i32_0 = arith.constant 0 : i32
    return %arg0, %c0_i32 : i32, i32
  }
  func.func @transform_3(%arg0: i32) -> (i32, i32) {
    %c0_i32 = arith.constant 0 : i32
    %c0_i32_0 = arith.constant 0 : i32
    return %arg0, %c0_i32 : i32, i32
  }
}

</mosaic_0001>

<llo_original>
// kernel: linear_forward.1
$region0: #{linear_forward.1}
  #allocation0 [shape = 'u32[]', space=smem, size = 0x4, offset = 0x4, fixed_abs, tag = 'smem constant byte address 0x4 - core index']
  #allocation1 [shape = 'u32[144,128]{1,0:T(1,128)}', space=vmem, size = 0x12000, scoped, tag = 'internal scratch']
  %s0 = inlined_call_operand.vmem [shape: f32[2,2], index: 0, kind: input, shape index: {}]
  %s1 = inlined_call_operand.vmem [shape: f32[2], index: 1, kind: input, shape index: {}]
  %s2 = inlined_call_operand.vmem [shape: f32[1,128], index: 2, kind: input, shape index: {}]
  %s3 = inlined_call_operand.vmem [shape: f32[1,128], index: 3, kind: output, shape index: {}]
  %s4 = sld [smem:[#allocation0]]
  $region30: #{linear_forward.1} parent=0
    _
  %s6 = ssub.s32 1, %s4
  %s7 = scalar_select 0, %s6, %s4
  $region1: #{linear_forward.1} parent=0
    #allocation2 [shape = 'u8[1024]{0}', space=smem, size = 0x400, scoped, tag = 'input window, operand 0, single buffered']
    #allocation3 [shape = 's32[1]{0}', space=sflag, size = 0x4, scoped, tag = 'scoped memory for linear_forward.1']
    #allocation4 [shape = 'u8[512]{0}', space=smem, size = 0x200, scoped, tag = 'input window, operand 1, single buffered']
    #allocation5 [shape = 's32[1]{0}', space=sflag, size = 0x4, scoped, tag = 'scoped memory for linear_forward.1']
    %8 = vsyncpa [#allocation3], 0
    %9 = vsyncpa [#allocation5], 0
    // Predicated region
    $region2: #{linear_forward.1} parent=1 // pred_check
      _
    $region3: #{linear_forward.1} parent=1 // pred_check_branch
      %11 = sbr.rel (0) target = $region5
    $region4: #{linear_forward.1} parent=1 // pred_region
      %s13 = ssub.s32 32, 32
      %14 = vsyncadd [#allocation3], %s13
      %s16 = sshll.u32 %s0, 4
      %s17 = int_to_ptr.vmem [resolvable:$true] %s16
      %19 = dma.vmem_to_smem %s17, 32, [#allocation2], [#allocation3]
    $region5: #{linear_forward.1} parent=1 // pred_fallthru
      _
    // Predicated region
    $region6: #{linear_forward.1} parent=1 // pred_check
      _
    $region7: #{linear_forward.1} parent=1 // pred_check_branch
      %21 = sbr.rel (0) target = $region9
    $region8: #{linear_forward.1} parent=1 // pred_region
      %s23 = ssub.s32 16, 16
      %24 = vsyncadd [#allocation5], %s23
      %s26 = sshll.u32 %s1, 4
      %s27 = int_to_ptr.vmem [resolvable:$true] %s26
      %29 = dma.vmem_to_smem %s27, 16, [#allocation4], [#allocation5]
    $region9: #{linear_forward.1} parent=1 // pred_fallthru
      _
    // Predicated region
    $region10: #{linear_forward.1} parent=1 // pred_check
      _
    $region11: #{linear_forward.1} parent=1 // pred_check_branch
      %31 = sbr.rel (0) target = $region13
    $region12: #{linear_forward.1} parent=1 // pred_region
      _
    $region13: #{linear_forward.1} parent=1 // pred_fallthru
      _
    // Predicated region
    $region14: #{linear_forward.1} parent=1 // pred_check
      _
    $region15: #{linear_forward.1} parent=1 // pred_check_branch
      %33 = sbr.rel (0) target = $region17
    $region16: #{linear_forward.1} parent=1 // pred_region
      %34 = dma.done [#allocation3], 32
    $region17: #{linear_forward.1} parent=1 // pred_fallthru
      _
    // Predicated region
    $region18: #{linear_forward.1} parent=1 // pred_check
      _
    $region19: #{linear_forward.1} parent=1 // pred_check_branch
      %36 = sbr.rel (0) target = $region21
    $region20: #{linear_forward.1} parent=1 // pred_region
      %37 = dma.done [#allocation5], 16
    $region21: #{linear_forward.1} parent=1 // pred_fallthru
      _
    %38 = sfence
    %v39 = vld [vmem:[%s2] sm:$0x1]
    %v40 = vlaneseq
    %v41 = vand.u32 %v40, 127
    %v42 = vand.u32 %v41, 1
    %vm43 = vcmp.eq.s32.totalorder %v42, 0
    %v44 = vxor.u32 %v41, 1
    %45 = vrot.lane.b32.xlu0 %v39, 1
    %v46 = vpop.permute.xlu0 %45
    %47 = vrot.lane.b32.xlu0 %v39, 127
    %v48 = vpop.permute.xlu0 %47
    %49 = vrot.lane.b32.xlu0 %v41, 1
    %v50 = vpop.permute.xlu0 %49
    %vm51 = vcmp.eq.s32.totalorder %v50, %v44
    %v52 = vsel %vm51, %v46, %v48
    %v53 = vsel %vm43, %v39, %v52
    %v54 = vsel %vm43, %v52, %v39
    %s55 = sld [smem:[#allocation2]]
    %s56 = sld [smem:[#allocation2 + $0x80]]
    %v57 = vstv %s55
    %v58 = vstv %s56
    %v59 = vsel %vm43, %v57, %v58
    %s60 = sld [smem:[#allocation2 + $0x1]]
    %s61 = sld [smem:[#allocation2 + $0x81]]
    %v62 = vstv %s60
    %v63 = vstv %s61
    %v64 = vsel %vm43, %v62, %v63
    %s65 = sld [smem:[#allocation4]]
    %s66 = sld [smem:[#allocation4 + $0x1]]
    %v67 = vstv %s65
    %v68 = vstv %s66
    %v69 = vsel %vm43, %v67, %v68
    %v70 = vmul.f32 %v53, %v59
    %v71 = vmul.f32 %v54, %v64
    %v72 = vadd.f32 %v70, %v71
    %v73 = vadd.f32 %v72, %v69
    %74 = vst [vmem:[%s3] sm:$0x1] %v73
    // Predicated region
    $region22: #{linear_forward.1} parent=1 // pred_check
      _
    $region23: #{linear_forward.1} parent=1 // pred_check_branch
      %76 = sbr.rel (0) target = $region25
    $region24: #{linear_forward.1} parent=1 // pred_region
      _
    $region25: #{linear_forward.1} parent=1 // pred_fallthru
      _
    // Predicated region
    $region26: #{linear_forward.1} parent=1 // pred_check
      _
    $region27: #{linear_forward.1} parent=1 // pred_check_branch
      %78 = sbr.rel (0) target = $region29
    $region28: #{linear_forward.1} parent=1 // pred_region
      _
    $region29: #{linear_forward.1} parent=1 // pred_fallthru
      _
    %79 = vsyncpa [#allocation3], 1
    %80 = vsyncpa [#allocation5], 1

</llo_original>
